<compile_context>
chip_gen: v7x
topology: tpu7x:2x2x1
jax: 0.10.0
libtpu: 0.0.40
codegen_flags: <defaults>
</compile_context>

<pallas_src>
import jax
import jax.numpy as jnp
from jax.experimental import pallas as pl
from jax.experimental.pallas import tpu as pltpu

C_IN = 20
C_OUT = 480
H = 14
W = 14
N = 1

# Channel-axis grid split: 2 blocks of 240 channels (240 % 8 == 0, sublane aligned).
C_BLOCKS = 2
C_BLK = C_OUT // C_BLOCKS


def se_gate_mul_kernel(x_se_ref, w_ref, b_ref, x_ref, o_ref):
    # x_se_ref: [1, C_IN]      squeeze vector (the 1x1 spatial conv input)
    # w_ref:    [C_BLK, C_IN]  1x1 conv weight slice, native (out, in) layout
    # b_ref:    [C_BLK, 1]     conv bias slice (column)
    # x_ref:    [C_BLK, H*W]   feature-map slice, native NCHW view
    # o_ref:    [C_BLK, H*W]   output slice
    #
    # 1x1 conv on a 1x1 spatial input == per-output-channel dot over C_IN.
    # C_IN is tiny (20), so do it as VPU multiply + lane reduce (XLU); the
    # broadcast multiply over H*W is the real (HBM-bound) work.
    gate = jnp.sum(w_ref[...] * x_se_ref[...], axis=1, keepdims=True) + b_ref[...]
    gate = jax.nn.sigmoid(gate)                            # exp/recip on EUP
    o_ref[...] = (x_ref[...] * gate).astype(o_ref.dtype)   # [C_BLK,1] bcast over lanes


def se_gate_mul(x97, x94, weight, bias):
    """x97: [N, C_IN, 1, 1], x94: [N, C_OUT, H, W],
    weight: [C_OUT, C_IN, 1, 1], bias: [C_OUT]."""
    n, c_out, h, w = x94.shape
    hw = h * w
    assert n == 1, "kernel assumes batch 1 (as in the reference module)"
    assert c_out % C_BLOCKS == 0

    # Zero-copy views: NCHW with N==1 is already [C_OUT, H*W] contiguous.
    x_2d = x94.reshape(c_out, hw)           # [480, 196]
    x_se = x97.reshape(1, C_IN)             # [1, 20]
    w_mat = weight.reshape(c_out, C_IN)     # [480, 20]  (native, no transpose)
    b_col = bias.reshape(c_out, 1)          # [480, 1]

    out_2d = pl.pallas_call(
        se_gate_mul_kernel,
        out_shape=jax.ShapeDtypeStruct((c_out, hw), x94.dtype),
        grid_spec=pl.GridSpec(
            grid=(C_BLOCKS,),
            in_specs=[
                pl.BlockSpec((1, C_IN), lambda i: (0, 0)),
                pl.BlockSpec((C_BLK, C_IN), lambda i: (i, 0)),
                pl.BlockSpec((C_BLK, 1), lambda i: (i, 0)),
                pl.BlockSpec((C_BLK, hw), lambda i: (i, 0)),
            ],
            out_specs=pl.BlockSpec((C_BLK, hw), lambda i: (i, 0)),
        ),
        compiler_params=pltpu.CompilerParams(
            dimension_semantics=("parallel",)),
    )(x_se, w_mat, b_col, x_2d)

    # Zero-copy view back to NCHW.
    return out_2d.reshape(n, c_out, h, w)

# TODO(synk): the larger win is fusing this SE gate-multiply into the adjacent
# conv/matmul kernel's output tile (saves one full read+write of x94).


if __name__ == "__main__":
    key = jax.random.PRNGKey(0)
    k_x94, k_x97, k_w, k_b = jax.random.split(key, 4)

    # Deterministic example inputs (shapes implied by the module's forward).
    x94 = jax.random.normal(k_x94, (N, C_OUT, H, W), dtype=jnp.float32)
    x97 = jax.random.normal(k_x97, (N, C_IN, 1, 1), dtype=jnp.float32)

    # Deterministic parameter init (Conv2d(20, 480, 1x1) weight + bias).
    fan_in = C_IN  # kernel_size 1x1
    bound = 1.0 / (fan_in ** 0.5)
    weight = jax.random.uniform(k_w, (C_OUT, C_IN, 1, 1),
                                minval=-bound, maxval=bound, dtype=jnp.float32)
    bias = jax.random.uniform(k_b, (C_OUT,),
                              minval=-bound, maxval=bound, dtype=jnp.float32)

    out = se_gate_mul(x97, x94, weight, bias)
    jax.block_until_ready(out)

    # Reference check in plain JAX (same math).
    gate_ref = jax.nn.sigmoid(
        jnp.einsum("oi,ni->no", weight.reshape(C_OUT, C_IN), x97.reshape(N, C_IN))
        + bias[None, :])                                   # [N, C_OUT]
    ref = x94 * gate_ref[:, :, None, None]
    assert out.shape == (N, C_OUT, H, W)
    assert jnp.allclose(out, ref, atol=1e-5, rtol=1e-5)

    print("KERNEL_OK")
</pallas_src>

<mosaic_0001>
module attributes {stable_mosaic.version = 11 : i64} {
  func.func @se_gate_mul_kernel(%arg0: i32, %arg1: memref<1x20xf32, #tpu.memory_space<vmem>>, %arg2: memref<240x20xf32, #tpu.memory_space<vmem>>, %arg3: memref<240x1xf32, #tpu.memory_space<vmem>>, %arg4: memref<240x196xf32, #tpu.memory_space<vmem>>, %arg5: memref<240x196xf32, #tpu.memory_space<vmem>>) attributes {dimension_semantics = [#tpu.dimension_semantics<parallel>], iteration_bounds = array<i64: 2>, scalar_prefetch = 0 : i64, scratch_operands = 0 : i64, tpu.core_type = #tpu.core_type<tc>, window_params = [{pipeline_mode = #tpu.pipeline_mode<synchronous>, transform_indices = @transform_0, window_bounds = array<i64: 1, 20>}, {transform_indices = @transform_1, window_bounds = array<i64: 240, 20>}, {transform_indices = @transform_2, window_bounds = array<i64: 240, 1>}, {transform_indices = @transform_3, window_bounds = array<i64: 240, 196>}, {transform_indices = @transform_4, window_bounds = array<i64: 240, 196>}]} {
    %c0 = arith.constant 0 : index
    %c0_0 = arith.constant 0 : index
    %0 = vector.load %arg2[%c0, %c0_0] : memref<240x20xf32, #tpu.memory_space<vmem>>, vector<240x20xf32>
    %c0_1 = arith.constant 0 : index
    %c0_2 = arith.constant 0 : index
    %1 = vector.load %arg1[%c0_1, %c0_2] : memref<1x20xf32, #tpu.memory_space<vmem>>, vector<1x20xf32>
    %2 = vector.broadcast %1 : vector<1x20xf32> to vector<240x20xf32>
    %3 = arith.mulf %0, %2 : vector<240x20xf32>
    %cst = arith.constant dense<0.000000e+00> : vector<240xf32>
    %4 = vector.multi_reduction <add>, %3, %cst [1] : vector<240x20xf32> to vector<240xf32>
    %5 = vector.shape_cast %4 : vector<240xf32> to vector<240x1xf32>
    %c0_3 = arith.constant 0 : index
    %c0_4 = arith.constant 0 : index
    %6 = vector.load %arg3[%c0_3, %c0_4] : memref<240x1xf32, #tpu.memory_space<vmem>>, vector<240x1xf32>
    %7 = arith.addf %5, %6 : vector<240x1xf32>
    %8 = arith.negf %7 : vector<240x1xf32>
    %9 = math.exp %8 : vector<240x1xf32>
    %cst_5 = arith.constant 1.000000e+00 : f32
    %10 = vector.broadcast %cst_5 : f32 to vector<240x1xf32>
    %11 = arith.addf %10, %9 : vector<240x1xf32>
    %12 = arith.divf %10, %11 : vector<240x1xf32>
    %c0_6 = arith.constant 0 : index
    %c0_7 = arith.constant 0 : index
    %13 = vector.load %arg4[%c0_6, %c0_7] : memref<240x196xf32, #tpu.memory_space<vmem>>, vector<240x196xf32>
    %14 = vector.broadcast %12 : vector<240x1xf32> to vector<240x196xf32>
    %15 = arith.mulf %13, %14 : vector<240x196xf32>
    %c0_8 = arith.constant 0 : index
    %c0_9 = arith.constant 0 : index
    %16 = vector.load %arg5[%c0_8, %c0_9] : memref<240x196xf32, #tpu.memory_space<vmem>>, vector<240x196xf32>
    tpu.vector_store %arg5[%c0_8, %c0_9], %15 {strides = array<i32>} : memref<240x196xf32, #tpu.memory_space<vmem>>, vector<240x196xf32>,
    return
  }
  func.func @transform_0(%arg0: i32) -> (i32, i32) {
    %c0_i32 = arith.constant 0 : i32
    %c0_i32_0 = arith.constant 0 : i32
    %c0_i32_1 = arith.constant 0 : i32
    return %c0_i32, %c0_i32_0 : i32, i32
  }
  func.func @transform_1(%arg0: i32) -> (i32, i32) {
    %c0_i32 = arith.constant 0 : i32
    %c0_i32_0 = arith.constant 0 : i32
    return %arg0, %c0_i32 : i32, i32
  }
  func.func @transform_2(%arg0: i32) -> (i32, i32) {
    %c0_i32 = arith.constant 0 : i32
    %c0_i32_0 = arith.constant 0 : i32
    return %arg0, %c0_i32 : i32, i32
  }
  func.func @transform_3(%arg0: i32) -> (i32, i32) {
    %c0_i32 = arith.constant 0 : i32
    %c0_i32_0 = arith.constant 0 : i32
    return %arg0, %c0_i32 : i32, i32
  }
  func.func @transform_4(%arg0: i32) -> (i32, i32) {
    %c0_i32 = arith.constant 0 : i32
    %c0_i32_0 = arith.constant 0 : i32
    return %arg0, %c0_i32 : i32, i32
  }
}

</mosaic_0001>

<llo_original>
// kernel: tpu_custom_call.1
$region0: #{tpu_custom_call.1}
  #allocation0 [shape = 'u32[]', space=smem, size = 0x4, offset = 0x4, fixed_abs, tag = 'smem constant byte address 0x4 - core index']
  #allocation1 [shape = 'u32[144,128]{1,0:T(1,128)}', space=vmem, size = 0x12000, scoped, tag = 'internal scratch']
  %s0 = inlined_call_operand.vmem [shape: f32[1,20], index: 0, kind: input, shape index: {}]
  %s1 = inlined_call_operand.vmem [shape: f32[480,20], index: 1, kind: input, shape index: {}]
  %s2 = inlined_call_operand.vmem [shape: f32[480,1], index: 2, kind: input, shape index: {}]
  %s3 = inlined_call_operand.vmem [shape: f32[480,196], index: 3, kind: input, shape index: {}]
  %s4 = inlined_call_operand.vmem [shape: f32[480,196], index: 4, kind: output, shape index: {}]
  %s5 = sld [smem:[#allocation0]]
  $region49: #{tpu_custom_call.1} parent=0
    _
  %s7 = ssub.s32 1, %s5
  %s8 = scalar_select 0, %s7, %s5
  loop: start=0, step=1, limit=4
  $region2: #{tpu_custom_call.1} parent=0 // loop_pre_header
    _
  $region3: #{tpu_custom_call.1} parent=0 // loop_header
    %s10 = sphi 0, %s14
    %p11 = scmp.ge.s32.totalorder %s10, 4
    %s18 = sphi 0, %s18
    %s20 = sphi 0, %s18
    %s21 = sphi 0, %s20
    %s35 = sphi 0, %s21
    %s41 = sphi 0, %s43
    %s44 = sphi 0, %s41
    %s45 = sphi 0, %s44
    %s61 = sphi 0, %s45
    %s67 = sphi 0, %s69
    %s70 = sphi 0, %s67
    %s71 = sphi 0, %s70
    %s87 = sphi 0, %s71
    %s93 = sphi 0, %s95
    %s96 = sphi 0, %s93
    %s97 = sphi 0, %s96
    %s113 = sphi 0, %s97
    %s119 = sphi 0, %s121
    %s122 = sphi 0, %s119
    %s123 = sphi 0, %s122
    %s139 = sphi 0, %s123
  $region4: #{tpu_custom_call.1} parent=0 // loop_header_branch
    %13 = sbr.rel (%p11) target = $region8
  $region5: #{tpu_custom_call.1} parent=0 // loop_body
    %s15 = ssub.s32 %s10, 1
    %s16 = ssub.s32 %s10, 2
    %s17 = sadd.s32 %s10, 1
    %s19 = sadd.s32 %s18, 1
    %p22 = scmp.eq.s32.totalorder %s10, 1
    %p23 = scmp.ne.s32.totalorder %s18, %s20
    %p24 = scmp.eq.s32.totalorder %s10, 0
    %p25 = por %p23, %p24
    %p26 = scmp.ne.s32.totalorder %s18, %s20
    %p27 = scmp.eq.s32.totalorder %s15, 1
    %p28 = por %p26, %p27
    %p29 = scmp.ne.s32.totalorder %s20, %s21
    %p30 = scmp.eq.s32.totalorder %s15, 0
    %p31 = por %p29, %p30
    %p32 = scmp.ne.s32.totalorder %s20, %s21
    %p33 = scmp.eq.s32.totalorder %s16, 1
    %p34 = por %p32, %p33
    %p36 = scmp.ne.s32.totalorder %s21, %s35
    %p37 = scmp.eq.s32.totalorder %s16, 0
    %p38 = por %p36, %p37
    %s39 = ssub.s32 %s10, %s17
    %p40 = scmp.eq.s32.totalorder %s39, 0
    %s42 = sadd.s32 %s41, 1
    %s43 = scalar_select %p40, %s41, %s42
    %p46 = pneg %p40
    %p47 = scmp.eq.s32.totalorder %s10, 1
    %p48 = por %p46, %p47
    %p49 = scmp.ne.s32.totalorder %s41, %s44
    %p50 = scmp.eq.s32.totalorder %s10, 0
    %p51 = por %p49, %p50
    %p52 = scmp.ne.s32.totalorder %s41, %s44
    %p53 = scmp.eq.s32.totalorder %s15, 1
    %p54 = por %p52, %p53
    %p55 = scmp.ne.s32.totalorder %s44, %s45
    %p56 = scmp.eq.s32.totalorder %s15, 0
    %p57 = por %p55, %p56
    %p58 = scmp.ne.s32.totalorder %s44, %s45
    %p59 = scmp.eq.s32.totalorder %s16, 1
    %p60 = por %p58, %p59
    %p62 = scmp.ne.s32.totalorder %s45, %s61
    %p63 = scmp.eq.s32.totalorder %s16, 0
    %p64 = por %p62, %p63
    %s65 = ssub.s32 %s10, %s17
    %p66 = scmp.eq.s32.totalorder %s65, 0
    %s68 = sadd.s32 %s67, 1
    %s69 = scalar_select %p66, %s67, %s68
    %p72 = pneg %p66
    %p73 = scmp.eq.s32.totalorder %s10, 1
    %p74 = por %p72, %p73
    %p75 = scmp.ne.s32.totalorder %s67, %s70
    %p76 = scmp.eq.s32.totalorder %s10, 0
    %p77 = por %p75, %p76
    %p78 = scmp.ne.s32.totalorder %s67, %s70
    %p79 = scmp.eq.s32.totalorder %s15, 1
    %p80 = por %p78, %p79
    %p81 = scmp.ne.s32.totalorder %s70, %s71
    %p82 = scmp.eq.s32.totalorder %s15, 0
    %p83 = por %p81, %p82
    %p84 = scmp.ne.s32.totalorder %s70, %s71
    %p85 = scmp.eq.s32.totalorder %s16, 1
    %p86 = por %p84, %p85
    %p88 = scmp.ne.s32.totalorder %s71, %s87
    %p89 = scmp.eq.s32.totalorder %s16, 0
    %p90 = por %p88, %p89
    %s91 = ssub.s32 %s10, %s17
    %p92 = scmp.eq.s32.totalorder %s91, 0
    %s94 = sadd.s32 %s93, 1
    %s95 = scalar_select %p92, %s93, %s94
    %p98 = pneg %p92
    %p99 = scmp.eq.s32.totalorder %s10, 1
    %p100 = por %p98, %p99
    %p101 = scmp.ne.s32.totalorder %s93, %s96
    %p102 = scmp.eq.s32.totalorder %s10, 0
    %p103 = por %p101, %p102
    %p104 = scmp.ne.s32.totalorder %s93, %s96
    %p105 = scmp.eq.s32.totalorder %s15, 1
    %p106 = por %p104, %p105
    %p107 = scmp.ne.s32.totalorder %s96, %s97
    %p108 = scmp.eq.s32.totalorder %s15, 0
    %p109 = por %p107, %p108
    %p110 = scmp.ne.s32.totalorder %s96, %s97
    %p111 = scmp.eq.s32.totalorder %s16, 1
    %p112 = por %p110, %p111
    %p114 = scmp.ne.s32.totalorder %s97, %s113
    %p115 = scmp.eq.s32.totalorder %s16, 0
    %p116 = por %p114, %p115
    %s117 = ssub.s32 %s10, %s17
    %p118 = scmp.eq.s32.totalorder %s117, 0
    %s120 = sadd.s32 %s119, 1
    %s121 = scalar_select %p118, %s119, %s120
    %p124 = pneg %p118
    %p125 = scmp.eq.s32.totalorder %s10, 1
    %p126 = por %p124, %p125
    %p127 = scmp.ne.s32.totalorder %s119, %s122
    %p128 = scmp.eq.s32.totalorder %s10, 0
    %p129 = por %p127, %p128
    %p130 = scmp.ne.s32.totalorder %s119, %s122
    %p131 = scmp.eq.s32.totalorder %s15, 1
    %p132 = por %p130, %p131
    %p133 = scmp.ne.s32.totalorder %s122, %s123
    %p134 = scmp.eq.s32.totalorder %s15, 0
    %p135 = por %p133, %p134
    %p136 = scmp.ne.s32.totalorder %s122, %s123
    %p137 = scmp.eq.s32.totalorder %s16, 1
    %p138 = por %p136, %p137
    %p140 = scmp.ne.s32.totalorder %s123, %s139
    %p141 = scmp.eq.s32.totalorder %s16, 0
    %p142 = por %p140, %p141
    %p143 = scmp.le.s32.totalorder 1, %s10
    %p144 = scmp.lt.s32.totalorder %s10, 3
    %p145 = pnand %p143, %p144
    %p146 = pneg %p145
    // Predicated region
    $region9: #{tpu_custom_call.1} parent=5 // pred_check
      _
    $region10: #{tpu_custom_call.1} parent=5 // pred_check_branch
      %148 = sbr.rel (%p145) target = $region12
    $region11: #{tpu_custom_call.1} parent=5 // pred_region
      %s149 = ssub.s32 %s10, 1
      // Predicated region
      $region13: #{tpu_custom_call.1} parent=11 // pred_check
        %p150 = pneg %p31
      $region14: #{tpu_custom_call.1} parent=11 // pred_check_branch
        %152 = sbr.rel (%p150) target = $region16
      $region15: #{tpu_custom_call.1} parent=11 // pred_region
        _
      $region16: #{tpu_custom_call.1} parent=11 // pred_fallthru
        _
    $region12: #{tpu_custom_call.1} parent=5 // pred_fallthru
      _
    %p153 = scmp.lt.s32.totalorder %s10, 2
    // Predicated region
    $region17: #{tpu_custom_call.1} parent=5 // pred_check
      %p154 = pneg %p153
    $region18: #{tpu_custom_call.1} parent=5 // pred_check_branch
      %156 = sbr.rel (%p154) target = $region20
    $region19: #{tpu_custom_call.1} parent=5 // pred_region
      // Predicated region
      $region21: #{tpu_custom_call.1} parent=19 // pred_check
        %p157 = pneg %p51
      $region22: #{tpu_custom_call.1} parent=19 // pred_check_branch
        %159 = sbr.rel (%p157) target = $region24
      $region23: #{tpu_custom_call.1} parent=19 // pred_region
        %s160 = smul.u32 30, %s10
        %p161 = scmp.lt.s32.totalorder %s160, 59
        %s162 = scalar_select %p161, %s160, 59
        %s163 = smul.addr %s162, 8
        %s164 = scalar_lea.vmem %s1, %s163
        %s165 = smul.u32 30, %s10
      $region24: #{tpu_custom_call.1} parent=19 // pred_fallthru
        _
      // Predicated region
      $region25: #{tpu_custom_call.1} parent=19 // pred_check
        %p166 = pneg %p77
      $region26: #{tpu_custom_call.1} parent=19 // pred_check_branch
        %168 = sbr.rel (%p166) target = $region28
      $region27: #{tpu_custom_call.1} parent=19 // pred_region
        %s169 = smul.u32 30, %s10
        %p170 = scmp.lt.s32.totalorder %s169, 59
        %s171 = scalar_select %p170, %s169, 59
        %s172 = smul.addr %s171, 8
        %s173 = scalar_lea.vmem %s2, %s172
        %s174 = smul.u32 30, %s10
      $region28: #{tpu_custom_call.1} parent=19 // pred_fallthru
        _
      // Predicated region
      $region29: #{tpu_custom_call.1} parent=19 // pred_check
        %p175 = pneg %p103
      $region30: #{tpu_custom_call.1} parent=19 // pred_check_branch
        %177 = sbr.rel (%p175) target = $region32
      $region31: #{tpu_custom_call.1} parent=19 // pred_region
        %s178 = smul.u32 30, %s10
        %p179 = scmp.lt.s32.totalorder %s178, 59
        %s180 = scalar_select %p179, %s178, 59
        %s181 = smul.addr %s180, 2
        %s182 = smul.addr %s181, 8
        %s183 = scalar_lea.vmem %s3, %s182
        %s184 = smul.u32 30, %s10
      $region32: #{tpu_custom_call.1} parent=19 // pred_fallthru
        _
    $region20: #{tpu_custom_call.1} parent=5 // pred_fallthru
      _
    %p185 = scmp.le.s32.totalorder 1, %s10
    %p186 = scmp.lt.s32.totalorder %s10, 3
    %p187 = pnand %p185, %p186
    %p188 = pneg %p187
    // Predicated region
    $region33: #{tpu_custom_call.1} parent=5 // pred_check
      _
    $region34: #{tpu_custom_call.1} parent=5 // pred_check_branch
      %190 = sbr.rel (%p187) target = $region36
    $region35: #{tpu_custom_call.1} parent=5 // pred_region
      %s191 = ssub.s32 %s10, 1
      %p192 = pneg %p31
      %p193 = pneg %p28
      %s194 = smul.u32 30, %s15
      %p195 = scmp.lt.s32.totalorder %s194, 59
      %s196 = scalar_select %p195, %s194, 59
      %s197 = smul.addr %s196, 8
      %s198 = scalar_lea.vmem %s1, %s197
      %p199 = pneg %p57
      %p200 = pneg %p54
      %s201 = smul.u32 30, %s15
      %p202 = scmp.lt.s32.totalorder %s201, 59
      %s203 = scalar_select %p202, %s201, 59
      %s204 = smul.addr %s203, 8
      %s205 = scalar_lea.vmem %s2, %s204
      %p206 = pneg %p83
      %p207 = pneg %p80
      %s208 = smul.u32 30, %s15
      %p209 = scmp.lt.s32.totalorder %s208, 59
      %s210 = scalar_select %p209, %s208, 59
      %s211 = smul.addr %s210, 2
      %s212 = smul.addr %s211, 8
      %s213 = scalar_lea.vmem %s3, %s212
      %p214 = pneg %p109
      %p215 = pneg %p106
      %p216 = pneg %p135
      %p217 = pneg %p132
      %s218 = smul.u32 30, %s15
      %p219 = scmp.lt.s32.totalorder %s218, 59
      %s220 = scalar_select %p219, %s218, 59
      %s221 = smul.addr %s220, 2
      %s222 = smul.addr %s221, 8
      %s223 = scalar_lea.vmem %s4, %s222
      %s224 = smul.u32 30, %s15
      %p225 = scmp.lt.s32.totalorder %s224, 59
      %s226 = scalar_select %p225, %s224, 59
      %s227 = smul.addr %s226, 8
      %s228 = scalar_lea.vmem %s1, %s227
      %s229 = smul.u32 30, %s15
      %s230 = smul.u32 30, %s15
      %p231 = scmp.lt.s32.totalorder %s230, 59
      %s232 = scalar_select %p231, %s230, 59
      %s233 = smul.addr %s232, 8
      %s234 = scalar_lea.vmem %s2, %s233
      %s235 = smul.u32 30, %s15
      %s236 = smul.u32 30, %s15
      %p237 = scmp.lt.s32.totalorder %s236, 59
      %s238 = scalar_select %p237, %s236, 59
      %s239 = smul.addr %s238, 2
      %s240 = smul.addr %s239, 8
      %s241 = scalar_lea.vmem %s3, %s240
      %s242 = smul.u32 30, %s15
      %s243 = smul.u32 30, %s15
      %p244 = scmp.lt.s32.totalorder %s243, 59
      %s245 = scalar_select %p244, %s243, 59
      %s246 = smul.addr %s245, 2
      %s247 = smul.addr %s246, 8
      %s248 = scalar_lea.vmem %s4, %s247
      %s249 = smul.u32 30, %s15
      %v250 = vld [vmem:[%s228] sm:$0xff]
      %v251 = vld [vmem:[%s228 + $0x8] sm:$0xff]
      %v252 = vld [vmem:[%s228 + $0x10] sm:$0xff]
      %v253 = vld [vmem:[%s228 + $0x18] sm:$0xff]
      %v254 = vld [vmem:[%s228 + $0x20] sm:$0xff]
      %v255 = vld [vmem:[%s228 + $0x28] sm:$0xff]
      %v256 = vld [vmem:[%s228 + $0x30] sm:$0xff]
      %v257 = vld [vmem:[%s228 + $0x38] sm:$0xff]
      %v258 = vld [vmem:[%s228 + $0x40] sm:$0xff]
      %v259 = vld [vmem:[%s228 + $0x48] sm:$0xff]
      %v260 = vld [vmem:[%s228 + $0x50] sm:$0xff]
      %v261 = vld [vmem:[%s228 + $0x58] sm:$0xff]
      %v262 = vld [vmem:[%s228 + $0x60] sm:$0xff]
      %v263 = vld [vmem:[%s228 + $0x68] sm:$0xff]
      %v264 = vld [vmem:[%s228 + $0x70] sm:$0xff]
      %v265 = vld [vmem:[%s228 + $0x78] sm:$0xff]
      %v266 = vld [vmem:[%s228 + $0x80] sm:$0xff]
      %v267 = vld [vmem:[%s228 + $0x88] sm:$0xff]
      %v268 = vld [vmem:[%s228 + $0x90] sm:$0xff]
      %v269 = vld [vmem:[%s228 + $0x98] sm:$0xff]
      %v270 = vld [vmem:[%s228 + $0xa0] sm:$0xff]
      %v271 = vld [vmem:[%s228 + $0xa8] sm:$0xff]
      %v272 = vld [vmem:[%s228 + $0xb0] sm:$0xff]
      %v273 = vld [vmem:[%s228 + $0xb8] sm:$0xff]
      %v274 = vld [vmem:[%s228 + $0xc0] sm:$0xff]
      %v275 = vld [vmem:[%s228 + $0xc8] sm:$0xff]
      %v276 = vld [vmem:[%s228 + $0xd0] sm:$0xff]
      %v277 = vld [vmem:[%s228 + $0xd8] sm:$0xff]
      %v278 = vld [vmem:[%s228 + $0xe0] sm:$0xff]
      %v279 = vld [vmem:[%s228 + $0xe8] sm:$0xff]
      %v280 = vld [vmem:[%s0] sm:$0x1]
      %v282 = vlaneseq
      %v283 = vshrl.u32 %v282, 7
      %v284 = vsub.s32 0, %v283
      %v285 = vrot.slane %v280, %v284
      %v287 = vmul.f32 %v250, %v285
      %v288 = vmul.f32 %v251, %v285
      %v289 = vmul.f32 %v252, %v285
      %v290 = vmul.f32 %v253, %v285
      %v291 = vmul.f32 %v254, %v285
      %v292 = vmul.f32 %v255, %v285
      %v293 = vmul.f32 %v256, %v285
      %v294 = vmul.f32 %v257, %v285
      %v295 = vmul.f32 %v258, %v285
      %v296 = vmul.f32 %v259, %v285
      %v297 = vmul.f32 %v260, %v285
      %v298 = vmul.f32 %v261, %v285
      %v299 = vmul.f32 %v262, %v285
      %v300 = vmul.f32 %v263, %v285
      %v301 = vmul.f32 %v264, %v285
      %v302 = vmul.f32 %v265, %v285
      %v303 = vmul.f32 %v266, %v285
      %v304 = vmul.f32 %v267, %v285
      %v305 = vmul.f32 %v268, %v285
      %v306 = vmul.f32 %v269, %v285
      %v307 = vmul.f32 %v270, %v285
      %v308 = vmul.f32 %v271, %v285
      %v309 = vmul.f32 %v272, %v285
      %v310 = vmul.f32 %v273, %v285
      %v311 = vmul.f32 %v274, %v285
      %v312 = vmul.f32 %v275, %v285
      %v313 = vmul.f32 %v276, %v285
      %v314 = vmul.f32 %v277, %v285
      %v315 = vmul.f32 %v278, %v285
      %v316 = vmul.f32 %v279, %v285
      %vm317 = vcmask 162816
      %v318 = vsel %vm317, %v287, 0.0
      %319 = vadd.xlane.f32.xlu0 %v318
      %v320 = vpop.xlane.xlu0 %319
      %v321 = vsel %vm317, %v288, 0.0
      %322 = vadd.xlane.f32.xlu0 %v321
      %v323 = vpop.xlane.xlu0 %322
      %v324 = vsel %vm317, %v289, 0.0
      %325 = vadd.xlane.f32.xlu0 %v324
      %v326 = vpop.xlane.xlu0 %325
      %v327 = vsel %vm317, %v290, 0.0
      %328 = vadd.xlane.f32.xlu0 %v327
      %v329 = vpop.xlane.xlu0 %328
      %v330 = vsel %vm317, %v291, 0.0
      %331 = vadd.xlane.f32.xlu0 %v330
      %v332 = vpop.xlane.xlu0 %331
      %v333 = vsel %vm317, %v292, 0.0
      %334 = vadd.xlane.f32.xlu0 %v333
      %v335 = vpop.xlane.xlu0 %334
      %v336 = vsel %vm317, %v293, 0.0
      %337 = vadd.xlane.f32.xlu0 %v336
      %v338 = vpop.xlane.xlu0 %337
      %v339 = vsel %vm317, %v294, 0.0
      %340 = vadd.xlane.f32.xlu0 %v339
      %v341 = vpop.xlane.xlu0 %340
      %v342 = vsel %vm317, %v295, 0.0
      %343 = vadd.xlane.f32.xlu0 %v342
      %v344 = vpop.xlane.xlu0 %343
      %v345 = vsel %vm317, %v296, 0.0
      %346 = vadd.xlane.f32.xlu0 %v345
      %v347 = vpop.xlane.xlu0 %346
      %v348 = vsel %vm317, %v297, 0.0
      %349 = vadd.xlane.f32.xlu0 %v348
      %v350 = vpop.xlane.xlu0 %349
      %v351 = vsel %vm317, %v298, 0.0
      %352 = vadd.xlane.f32.xlu0 %v351
      %v353 = vpop.xlane.xlu0 %352
      %v354 = vsel %vm317, %v299, 0.0
      %355 = vadd.xlane.f32.xlu0 %v354
      %v356 = vpop.xlane.xlu0 %355
      %v357 = vsel %vm317, %v300, 0.0
      %358 = vadd.xlane.f32.xlu0 %v357
      %v359 = vpop.xlane.xlu0 %358
      %v360 = vsel %vm317, %v301, 0.0
      %361 = vadd.xlane.f32.xlu0 %v360
      %v362 = vpop.xlane.xlu0 %361
      %v363 = vsel %vm317, %v302, 0.0
      %364 = vadd.xlane.f32.xlu0 %v363
      %v365 = vpop.xlane.xlu0 %364
      %v366 = vsel %vm317, %v303, 0.0
      %367 = vadd.xlane.f32.xlu0 %v366
      %v368 = vpop.xlane.xlu0 %367
      %v369 = vsel %vm317, %v304, 0.0
      %370 = vadd.xlane.f32.xlu0 %v369
      %v371 = vpop.xlane.xlu0 %370
      %v372 = vsel %vm317, %v305, 0.0
      %373 = vadd.xlane.f32.xlu0 %v372
      %v374 = vpop.xlane.xlu0 %373
      %v375 = vsel %vm317, %v306, 0.0
      %376 = vadd.xlane.f32.xlu0 %v375
      %v377 = vpop.xlane.xlu0 %376
      %v378 = vsel %vm317, %v307, 0.0
      %379 = vadd.xlane.f32.xlu0 %v378
      %v380 = vpop.xlane.xlu0 %379
      %v381 = vsel %vm317, %v308, 0.0
      %382 = vadd.xlane.f32.xlu0 %v381
      %v383 = vpop.xlane.xlu0 %382
      %v384 = vsel %vm317, %v309, 0.0
      %385 = vadd.xlane.f32.xlu0 %v384
      %v386 = vpop.xlane.xlu0 %385
      %v387 = vsel %vm317, %v310, 0.0
      %388 = vadd.xlane.f32.xlu0 %v387
      %v389 = vpop.xlane.xlu0 %388
      %v390 = vsel %vm317, %v311, 0.0
      %391 = vadd.xlane.f32.xlu0 %v390
      %v392 = vpop.xlane.xlu0 %391
      %v393 = vsel %vm317, %v312, 0.0
      %394 = vadd.xlane.f32.xlu0 %v393
      %v395 = vpop.xlane.xlu0 %394
      %v396 = vsel %vm317, %v313, 0.0
      %397 = vadd.xlane.f32.xlu0 %v396
      %v398 = vpop.xlane.xlu0 %397
      %v399 = vsel %vm317, %v314, 0.0
      %400 = vadd.xlane.f32.xlu0 %v399
      %v401 = vpop.xlane.xlu0 %400
      %v402 = vsel %vm317, %v315, 0.0
      %403 = vadd.xlane.f32.xlu0 %v402
      %v404 = vpop.xlane.xlu0 %403
      %v405 = vsel %vm317, %v316, 0.0
      %406 = vadd.xlane.f32.xlu0 %v405
      %v407 = vpop.xlane.xlu0 %406
      %v408 = vld [vmem:[%s234] sm:$0xff]
      %v409 = vld [vmem:[%s234 + $0x8] sm:$0xff]
      %v410 = vld [vmem:[%s234 + $0x10] sm:$0xff]
      %v411 = vld [vmem:[%s234 + $0x18] sm:$0xff]
      %v412 = vld [vmem:[%s234 + $0x20] sm:$0xff]
      %v413 = vld [vmem:[%s234 + $0x28] sm:$0xff]
      %v414 = vld [vmem:[%s234 + $0x30] sm:$0xff]
      %v415 = vld [vmem:[%s234 + $0x38] sm:$0xff]
      %v416 = vld [vmem:[%s234 + $0x40] sm:$0xff]
      %v417 = vld [vmem:[%s234 + $0x48] sm:$0xff]
      %v418 = vld [vmem:[%s234 + $0x50] sm:$0xff]
      %v419 = vld [vmem:[%s234 + $0x58] sm:$0xff]
      %v420 = vld [vmem:[%s234 + $0x60] sm:$0xff]
      %v421 = vld [vmem:[%s234 + $0x68] sm:$0xff]
      %v422 = vld [vmem:[%s234 + $0x70] sm:$0xff]
      %v423 = vld [vmem:[%s234 + $0x78] sm:$0xff]
      %v424 = vld [vmem:[%s234 + $0x80] sm:$0xff]
      %v425 = vld [vmem:[%s234 + $0x88] sm:$0xff]
      %v426 = vld [vmem:[%s234 + $0x90] sm:$0xff]
      %v427 = vld [vmem:[%s234 + $0x98] sm:$0xff]
      %v428 = vld [vmem:[%s234 + $0xa0] sm:$0xff]
      %v429 = vld [vmem:[%s234 + $0xa8] sm:$0xff]
      %v430 = vld [vmem:[%s234 + $0xb0] sm:$0xff]
      %v431 = vld [vmem:[%s234 + $0xb8] sm:$0xff]
      %v432 = vld [vmem:[%s234 + $0xc0] sm:$0xff]
      %v433 = vld [vmem:[%s234 + $0xc8] sm:$0xff]
      %v434 = vld [vmem:[%s234 + $0xd0] sm:$0xff]
      %v435 = vld [vmem:[%s234 + $0xd8] sm:$0xff]
      %v436 = vld [vmem:[%s234 + $0xe0] sm:$0xff]
      %v437 = vld [vmem:[%s234 + $0xe8] sm:$0xff]
      %v438 = vadd.f32 %v320, %v408
      %v439 = vadd.f32 %v323, %v409
      %v440 = vadd.f32 %v326, %v410
      %v441 = vadd.f32 %v329, %v411
      %v442 = vadd.f32 %v332, %v412
      %v443 = vadd.f32 %v335, %v413
      %v444 = vadd.f32 %v338, %v414
      %v445 = vadd.f32 %v341, %v415
      %v446 = vadd.f32 %v344, %v416
      %v447 = vadd.f32 %v347, %v417
      %v448 = vadd.f32 %v350, %v418
      %v449 = vadd.f32 %v353, %v419
      %v450 = vadd.f32 %v356, %v420
      %v451 = vadd.f32 %v359, %v421
      %v452 = vadd.f32 %v362, %v422
      %v453 = vadd.f32 %v365, %v423
      %v454 = vadd.f32 %v368, %v424
      %v455 = vadd.f32 %v371, %v425
      %v456 = vadd.f32 %v374, %v426
      %v457 = vadd.f32 %v377, %v427
      %v458 = vadd.f32 %v380, %v428
      %v459 = vadd.f32 %v383, %v429
      %v460 = vadd.f32 %v386, %v430
      %v461 = vadd.f32 %v389, %v431
      %v462 = vadd.f32 %v392, %v432
      %v463 = vadd.f32 %v395, %v433
      %v464 = vadd.f32 %v398, %v434
      %v465 = vadd.f32 %v401, %v435
      %v466 = vadd.f32 %v404, %v436
      %v467 = vadd.f32 %v407, %v437
      %v468 = vxor.u32 %v438, 2147483648
      %v469 = vxor.u32 %v439, 2147483648
      %v470 = vxor.u32 %v440, 2147483648
      %v471 = vxor.u32 %v441, 2147483648
      %v472 = vxor.u32 %v442, 2147483648
      %v473 = vxor.u32 %v443, 2147483648
      %v474 = vxor.u32 %v444, 2147483648
      %v475 = vxor.u32 %v445, 2147483648
      %v476 = vxor.u32 %v446, 2147483648
      %v477 = vxor.u32 %v447, 2147483648
      %v478 = vxor.u32 %v448, 2147483648
      %v479 = vxor.u32 %v449, 2147483648
      %v480 = vxor.u32 %v450, 2147483648
      %v481 = vxor.u32 %v451, 2147483648
      %v482 = vxor.u32 %v452, 2147483648
      %v483 = vxor.u32 %v453, 2147483648
      %v484 = vxor.u32 %v454, 2147483648
      %v485 = vxor.u32 %v455, 2147483648
      %v486 = vxor.u32 %v456, 2147483648
      %v487 = vxor.u32 %v457, 2147483648
      %v488 = vxor.u32 %v458, 2147483648
      %v489 = vxor.u32 %v459, 2147483648
      %v490 = vxor.u32 %v460, 2147483648
      %v491 = vxor.u32 %v461, 2147483648
      %v492 = vxor.u32 %v462, 2147483648
      %v493 = vxor.u32 %v463, 2147483648
      %v494 = vxor.u32 %v464, 2147483648
      %v495 = vxor.u32 %v465, 2147483648
      %v496 = vxor.u32 %v466, 2147483648
      %v497 = vxor.u32 %v467, 2147483648
      %v498 = vmul.f32 %v468, 1.442695
      %v499 = vpow.pop %v498
      %v500 = vmul.f32 %v469, 1.442695
      %v501 = vpow.pop %v500
      %v502 = vmul.f32 %v470, 1.442695
      %v503 = vpow.pop %v502
      %v504 = vmul.f32 %v471, 1.442695
      %v505 = vpow.pop %v504
      %v506 = vmul.f32 %v472, 1.442695
      %v507 = vpow.pop %v506
      %v508 = vmul.f32 %v473, 1.442695
      %v509 = vpow.pop %v508
      %v510 = vmul.f32 %v474, 1.442695
      %v511 = vpow.pop %v510
      %v512 = vmul.f32 %v475, 1.442695
      %v513 = vpow.pop %v512
      %v514 = vmul.f32 %v476, 1.442695
      %v515 = vpow.pop %v514
      %v516 = vmul.f32 %v477, 1.442695
      %v517 = vpow.pop %v516
      %v518 = vmul.f32 %v478, 1.442695
      %v519 = vpow.pop %v518
      %v520 = vmul.f32 %v479, 1.442695
      %v521 = vpow.pop %v520
      %v522 = vmul.f32 %v480, 1.442695
      %v523 = vpow.pop %v522
      %v524 = vmul.f32 %v481, 1.442695
      %v525 = vpow.pop %v524
      %v526 = vmul.f32 %v482, 1.442695
      %v527 = vpow.pop %v526
      %v528 = vmul.f32 %v483, 1.442695
      %v529 = vpow.pop %v528
      %v530 = vmul.f32 %v484, 1.442695
      %v531 = vpow.pop %v530
      %v532 = vmul.f32 %v485, 1.442695
      %v533 = vpow.pop %v532
      %v534 = vmul.f32 %v486, 1.442695
      %v535 = vpow.pop %v534
      %v536 = vmul.f32 %v487, 1.442695
      %v537 = vpow.pop %v536
      %v538 = vmul.f32 %v488, 1.442695
      %v539 = vpow.pop %v538
      %v540 = vmul.f32 %v489, 1.442695
      %v541 = vpow.pop %v540
      %v542 = vmul.f32 %v490, 1.442695
      %v543 = vpow.pop %v542
      %v544 = vmul.f32 %v491, 1.442695
      %v545 = vpow.pop %v544
      %v546 = vmul.f32 %v492, 1.442695
      %v547 = vpow.pop %v546
      %v548 = vmul.f32 %v493, 1.442695
      %v549 = vpow.pop %v548
      %v550 = vmul.f32 %v494, 1.442695
      %v551 = vpow.pop %v550
      %v552 = vmul.f32 %v495, 1.442695
      %v553 = vpow.pop %v552
      %v554 = vmul.f32 %v496, 1.442695
      %v555 = vpow.pop %v554
      %v556 = vmul.f32 %v497, 1.442695
      %v557 = vpow.pop %v556
      %v558 = vadd.f32 %v499, 1.0
      %v559 = vadd.f32 %v501, 1.0
      %v560 = vadd.f32 %v503, 1.0
      %v561 = vadd.f32 %v505, 1.0
      %v562 = vadd.f32 %v507, 1.0
      %v563 = vadd.f32 %v509, 1.0
      %v564 = vadd.f32 %v511, 1.0
      %v565 = vadd.f32 %v513, 1.0
      %v566 = vadd.f32 %v515, 1.0
      %v567 = vadd.f32 %v517, 1.0
      %v568 = vadd.f32 %v519, 1.0
      %v569 = vadd.f32 %v521, 1.0
      %v570 = vadd.f32 %v523, 1.0
      %v571 = vadd.f32 %v525, 1.0
      %v572 = vadd.f32 %v527, 1.0
      %v573 = vadd.f32 %v529, 1.0
      %v574 = vadd.f32 %v531, 1.0
      %v575 = vadd.f32 %v533, 1.0
      %v576 = vadd.f32 %v535, 1.0
      %v577 = vadd.f32 %v537, 1.0
      %v578 = vadd.f32 %v539, 1.0
      %v579 = vadd.f32 %v541, 1.0
      %v580 = vadd.f32 %v543, 1.0
      %v581 = vadd.f32 %v545, 1.0
      %v582 = vadd.f32 %v547, 1.0
      %v583 = vadd.f32 %v549, 1.0
      %v584 = vadd.f32 %v551, 1.0
      %v585 = vadd.f32 %v553, 1.0
      %v586 = vadd.f32 %v555, 1.0
      %v587 = vadd.f32 %v557, 1.0
      %v588 = vrcp.pop %v558
      %v589 = vmul.f32 1.0, %v588
      %v590 = vrcp.pop %v559
      %v591 = vmul.f32 1.0, %v590
      %v592 = vrcp.pop %v560
      %v593 = vmul.f32 1.0, %v592
      %v594 = vrcp.pop %v561
      %v595 = vmul.f32 1.0, %v594
      %v596 = vrcp.pop %v562
      %v597 = vmul.f32 1.0, %v596
      %v598 = vrcp.pop %v563
      %v599 = vmul.f32 1.0, %v598
      %v600 = vrcp.pop %v564
      %v601 = vmul.f32 1.0, %v600
      %v602 = vrcp.pop %v565
      %v603 = vmul.f32 1.0, %v602
      %v604 = vrcp.pop %v566
      %v605 = vmul.f32 1.0, %v604
      %v606 = vrcp.pop %v567
      %v607 = vmul.f32 1.0, %v606
      %v608 = vrcp.pop %v568
      %v609 = vmul.f32 1.0, %v608
      %v610 = vrcp.pop %v569
      %v611 = vmul.f32 1.0, %v610
      %v612 = vrcp.pop %v570
      %v613 = vmul.f32 1.0, %v612
      %v614 = vrcp.pop %v571
      %v615 = vmul.f32 1.0, %v614
      %v616 = vrcp.pop %v572
      %v617 = vmul.f32 1.0, %v616
      %v618 = vrcp.pop %v573
      %v619 = vmul.f32 1.0, %v618
      %v620 = vrcp.pop %v574
      %v621 = vmul.f32 1.0, %v620
      %v622 = vrcp.pop %v575
      %v623 = vmul.f32 1.0, %v622
      %v624 = vrcp.pop %v576
      %v625 = vmul.f32 1.0, %v624
      %v626 = vrcp.pop %v577
      %v627 = vmul.f32 1.0, %v626
      %v628 = vrcp.pop %v578
      %v629 = vmul.f32 1.0, %v628
      %v630 = vrcp.pop %v579
      %v631 = vmul.f32 1.0, %v630
      %v632 = vrcp.pop %v580
      %v633 = vmul.f32 1.0, %v632
      %v634 = vrcp.pop %v581
      %v635 = vmul.f32 1.0, %v634
      %v636 = vrcp.pop %v582
      %v637 = vmul.f32 1.0, %v636
      %v638 = vrcp.pop %v583
      %v639 = vmul.f32 1.0, %v638
      %v640 = vrcp.pop %v584
      %v641 = vmul.f32 1.0, %v640
      %v642 = vrcp.pop %v585
      %v643 = vmul.f32 1.0, %v642
      %v644 = vrcp.pop %v586
      %v645 = vmul.f32 1.0, %v644
      %v646 = vrcp.pop %v587
      %v647 = vmul.f32 1.0, %v646
      %v648 = vld [vmem:[%s241] sm:$0xff]
      %v649 = vld [vmem:[%s241 + $0x8] sm:$0xff]
      %v650 = vld [vmem:[%s241 + $0x10] sm:$0xff]
      %v651 = vld [vmem:[%s241 + $0x18] sm:$0xff]
      %v652 = vld [vmem:[%s241 + $0x20] sm:$0xff]
      %v653 = vld [vmem:[%s241 + $0x28] sm:$0xff]
      %v654 = vld [vmem:[%s241 + $0x30] sm:$0xff]
      %v655 = vld [vmem:[%s241 + $0x38] sm:$0xff]
      %v656 = vld [vmem:[%s241 + $0x40] sm:$0xff]
      %v657 = vld [vmem:[%s241 + $0x48] sm:$0xff]
      %v658 = vld [vmem:[%s241 + $0x50] sm:$0xff]
      %v659 = vld [vmem:[%s241 + $0x58] sm:$0xff]
      %v660 = vld [vmem:[%s241 + $0x60] sm:$0xff]
      %v661 = vld [vmem:[%s241 + $0x68] sm:$0xff]
      %v662 = vld [vmem:[%s241 + $0x70] sm:$0xff]
      %v663 = vld [vmem:[%s241 + $0x78] sm:$0xff]
      %v664 = vld [vmem:[%s241 + $0x80] sm:$0xff]
      %v665 = vld [vmem:[%s241 + $0x88] sm:$0xff]
      %v666 = vld [vmem:[%s241 + $0x90] sm:$0xff]
      %v667 = vld [vmem:[%s241 + $0x98] sm:$0xff]
      %v668 = vld [vmem:[%s241 + $0xa0] sm:$0xff]
      %v669 = vld [vmem:[%s241 + $0xa8] sm:$0xff]
      %v670 = vld [vmem:[%s241 + $0xb0] sm:$0xff]
      %v671 = vld [vmem:[%s241 + $0xb8] sm:$0xff]
      %v672 = vld [vmem:[%s241 + $0xc0] sm:$0xff]
      %v673 = vld [vmem:[%s241 + $0xc8] sm:$0xff]
      %v674 = vld [vmem:[%s241 + $0xd0] sm:$0xff]
      %v675 = vld [vmem:[%s241 + $0xd8] sm:$0xff]
      %v676 = vld [vmem:[%s241 + $0xe0] sm:$0xff]
      %v677 = vld [vmem:[%s241 + $0xe8] sm:$0xff]
      %v678 = vld [vmem:[%s241 + $0xf0] sm:$0xff]
      %v679 = vld [vmem:[%s241 + $0xf8] sm:$0xff]
      %v680 = vld [vmem:[%s241 + $0x100] sm:$0xff]
      %v681 = vld [vmem:[%s241 + $0x108] sm:$0xff]
      %v682 = vld [vmem:[%s241 + $0x110] sm:$0xff]
      %v683 = vld [vmem:[%s241 + $0x118] sm:$0xff]
      %v684 = vld [vmem:[%s241 + $0x120] sm:$0xff]
      %v685 = vld [vmem:[%s241 + $0x128] sm:$0xff]
      %v686 = vld [vmem:[%s241 + $0x130] sm:$0xff]
      %v687 = vld [vmem:[%s241 + $0x138] sm:$0xff]
      %v688 = vld [vmem:[%s241 + $0x140] sm:$0xff]
      %v689 = vld [vmem:[%s241 + $0x148] sm:$0xff]
      %v690 = vld [vmem:[%s241 + $0x150] sm:$0xff]
      %v691 = vld [vmem:[%s241 + $0x158] sm:$0xff]
      %v692 = vld [vmem:[%s241 + $0x160] sm:$0xff]
      %v693 = vld [vmem:[%s241 + $0x168] sm:$0xff]
      %v694 = vld [vmem:[%s241 + $0x170] sm:$0xff]
      %v695 = vld [vmem:[%s241 + $0x178] sm:$0xff]
      %v696 = vld [vmem:[%s241 + $0x180] sm:$0xff]
      %v697 = vld [vmem:[%s241 + $0x188] sm:$0xff]
      %v698 = vld [vmem:[%s241 + $0x190] sm:$0xff]
      %v699 = vld [vmem:[%s241 + $0x198] sm:$0xff]
      %v700 = vld [vmem:[%s241 + $0x1a0] sm:$0xff]
      %v701 = vld [vmem:[%s241 + $0x1a8] sm:$0xff]
      %v702 = vld [vmem:[%s241 + $0x1b0] sm:$0xff]
      %v703 = vld [vmem:[%s241 + $0x1b8] sm:$0xff]
      %v704 = vld [vmem:[%s241 + $0x1c0] sm:$0xff]
      %v705 = vld [vmem:[%s241 + $0x1c8] sm:$0xff]
      %v706 = vld [vmem:[%s241 + $0x1d0] sm:$0xff]
      %v707 = vld [vmem:[%s241 + $0x1d8] sm:$0xff]
      %709 = vset.pattern.permute.xlu0 0
      %710 = vperm.xlu0 %709, %v589
      %v711 = vpop.permute.xlu0 %710
      %714 = vset.pattern.permute.xlu0 0
      %715 = vperm.xlu0 %714, %v591
      %v716 = vpop.permute.xlu0 %715
      %719 = vset.pattern.permute.xlu0 0
      %720 = vperm.xlu0 %719, %v593
      %v721 = vpop.permute.xlu0 %720
      %724 = vset.pattern.permute.xlu0 0
      %725 = vperm.xlu0 %724, %v595
      %v726 = vpop.permute.xlu0 %725
      %729 = vset.pattern.permute.xlu0 0
      %730 = vperm.xlu0 %729, %v597
      %v731 = vpop.permute.xlu0 %730
      %734 = vset.pattern.permute.xlu0 0
      %735 = vperm.xlu0 %734, %v599
      %v736 = vpop.permute.xlu0 %735
      %739 = vset.pattern.permute.xlu0 0
      %740 = vperm.xlu0 %739, %v601
      %v741 = vpop.permute.xlu0 %740
      %744 = vset.pattern.permute.xlu0 0
      %745 = vperm.xlu0 %744, %v603
      %v746 = vpop.permute.xlu0 %745
      %749 = vset.pattern.permute.xlu0 0
      %750 = vperm.xlu0 %749, %v605
      %v751 = vpop.permute.xlu0 %750
      %754 = vset.pattern.permute.xlu0 0
      %755 = vperm.xlu0 %754, %v607
      %v756 = vpop.permute.xlu0 %755
      %759 = vset.pattern.permute.xlu0 0
      %760 = vperm.xlu0 %759, %v609
      %v761 = vpop.permute.xlu0 %760
      %764 = vset.pattern.permute.xlu0 0
      %765 = vperm.xlu0 %764, %v611
      %v766 = vpop.permute.xlu0 %765
      %769 = vset.pattern.permute.xlu0 0
      %770 = vperm.xlu0 %769, %v613
      %v771 = vpop.permute.xlu0 %770
      %774 = vset.pattern.permute.xlu0 0
      %775 = vperm.xlu0 %774, %v615
      %v776 = vpop.permute.xlu0 %775
      %779 = vset.pattern.permute.xlu0 0
      %780 = vperm.xlu0 %779, %v617
      %v781 = vpop.permute.xlu0 %780
      %784 = vset.pattern.permute.xlu0 0
      %785 = vperm.xlu0 %784, %v619
      %v786 = vpop.permute.xlu0 %785
      %789 = vset.pattern.permute.xlu0 0
      %790 = vperm.xlu0 %789, %v621
      %v791 = vpop.permute.xlu0 %790
      %794 = vset.pattern.permute.xlu0 0
      %795 = vperm.xlu0 %794, %v623
      %v796 = vpop.permute.xlu0 %795
      %799 = vset.pattern.permute.xlu0 0
      %800 = vperm.xlu0 %799, %v625
      %v801 = vpop.permute.xlu0 %800
      %804 = vset.pattern.permute.xlu0 0
      %805 = vperm.xlu0 %804, %v627
      %v806 = vpop.permute.xlu0 %805
      %809 = vset.pattern.permute.xlu0 0
      %810 = vperm.xlu0 %809, %v629
      %v811 = vpop.permute.xlu0 %810
      %814 = vset.pattern.permute.xlu0 0
      %815 = vperm.xlu0 %814, %v631
      %v816 = vpop.permute.xlu0 %815
      %819 = vset.pattern.permute.xlu0 0
      %820 = vperm.xlu0 %819, %v633
      %v821 = vpop.permute.xlu0 %820
      %824 = vset.pattern.permute.xlu0 0
      %825 = vperm.xlu0 %824, %v635
      %v826 = vpop.permute.xlu0 %825
      %829 = vset.pattern.permute.xlu0 0
      %830 = vperm.xlu0 %829, %v637
      %v831 = vpop.permute.xlu0 %830
      %834 = vset.pattern.permute.xlu0 0
      %835 = vperm.xlu0 %834, %v639
      %v836 = vpop.permute.xlu0 %835
      %839 = vset.pattern.permute.xlu0 0
      %840 = vperm.xlu0 %839, %v641
      %v841 = vpop.permute.xlu0 %840
      %844 = vset.pattern.permute.xlu0 0
      %845 = vperm.xlu0 %844, %v643
      %v846 = vpop.permute.xlu0 %845
      %849 = vset.pattern.permute.xlu0 0
      %850 = vperm.xlu0 %849, %v645
      %v851 = vpop.permute.xlu0 %850
      %854 = vset.pattern.permute.xlu0 0
      %855 = vperm.xlu0 %854, %v647
      %v856 = vpop.permute.xlu0 %855
      %v858 = vmul.f32 %v648, %v711
      %v859 = vmul.f32 %v649, %v711
      %v860 = vmul.f32 %v650, %v716
      %v861 = vmul.f32 %v651, %v716
      %v862 = vmul.f32 %v652, %v721
      %v863 = vmul.f32 %v653, %v721
      %v864 = vmul.f32 %v654, %v726
      %v865 = vmul.f32 %v655, %v726
      %v866 = vmul.f32 %v656, %v731
      %v867 = vmul.f32 %v657, %v731
      %v868 = vmul.f32 %v658, %v736
      %v869 = vmul.f32 %v659, %v736
      %v870 = vmul.f32 %v660, %v741
      %v871 = vmul.f32 %v661, %v741
      %v872 = vmul.f32 %v662, %v746
      %v873 = vmul.f32 %v663, %v746
      %v874 = vmul.f32 %v664, %v751
      %v875 = vmul.f32 %v665, %v751
      %v876 = vmul.f32 %v666, %v756
      %v877 = vmul.f32 %v667, %v756
      %v878 = vmul.f32 %v668, %v761
      %v879 = vmul.f32 %v669, %v761
      %v880 = vmul.f32 %v670, %v766
      %v881 = vmul.f32 %v671, %v766
      %v882 = vmul.f32 %v672, %v771
      %v883 = vmul.f32 %v673, %v771
      %v884 = vmul.f32 %v674, %v776
      %v885 = vmul.f32 %v675, %v776
      %v886 = vmul.f32 %v676, %v781
      %v887 = vmul.f32 %v677, %v781
      %v888 = vmul.f32 %v678, %v786
      %v889 = vmul.f32 %v679, %v786
      %v890 = vmul.f32 %v680, %v791
      %v891 = vmul.f32 %v681, %v791
      %v892 = vmul.f32 %v682, %v796
      %v893 = vmul.f32 %v683, %v796
      %v894 = vmul.f32 %v684, %v801
      %v895 = vmul.f32 %v685, %v801
      %v896 = vmul.f32 %v686, %v806
      %v897 = vmul.f32 %v687, %v806
      %v898 = vmul.f32 %v688, %v811
      %v899 = vmul.f32 %v689, %v811
      %v900 = vmul.f32 %v690, %v816
      %v901 = vmul.f32 %v691, %v816
      %v902 = vmul.f32 %v692, %v821
      %v903 = vmul.f32 %v693, %v821
      %v904 = vmul.f32 %v694, %v826
      %v905 = vmul.f32 %v695, %v826
      %v906 = vmul.f32 %v696, %v831
      %v907 = vmul.f32 %v697, %v831
      %v908 = vmul.f32 %v698, %v836
      %v909 = vmul.f32 %v699, %v836
      %v910 = vmul.f32 %v700, %v841
      %v911 = vmul.f32 %v701, %v841
      %v912 = vmul.f32 %v702, %v846
      %v913 = vmul.f32 %v703, %v846
      %v914 = vmul.f32 %v704, %v851
      %v915 = vmul.f32 %v705, %v851
      %v916 = vmul.f32 %v706, %v856
      %v917 = vmul.f32 %v707, %v856
      %918 = vst [vmem:[%s248] sm:$0xff] %v858
      %vm919 = vcmask 556032
      %920 = vst.msk [vmem:[%s248 + $0x8] sm:$0xff] %vm919, %v859
      %921 = vst [vmem:[%s248 + $0x10] sm:$0xff] %v860
      %922 = vst.msk [vmem:[%s248 + $0x18] sm:$0xff] %vm919, %v861
      %923 = vst [vmem:[%s248 + $0x20] sm:$0xff] %v862
      %924 = vst.msk [vmem:[%s248 + $0x28] sm:$0xff] %vm919, %v863
      %925 = vst [vmem:[%s248 + $0x30] sm:$0xff] %v864
      %926 = vst.msk [vmem:[%s248 + $0x38] sm:$0xff] %vm919, %v865
      %927 = vst [vmem:[%s248 + $0x40] sm:$0xff] %v866
      %928 = vst.msk [vmem:[%s248 + $0x48] sm:$0xff] %vm919, %v867
      %929 = vst [vmem:[%s248 + $0x50] sm:$0xff] %v868
      %930 = vst.msk [vmem:[%s248 + $0x58] sm:$0xff] %vm919, %v869
      %931 = vst [vmem:[%s248 + $0x60] sm:$0xff] %v870
      %932 = vst.msk [vmem:[%s248 + $0x68] sm:$0xff] %vm919, %v871
      %933 = vst [vmem:[%s248 + $0x70] sm:$0xff] %v872
      %934 = vst.msk [vmem:[%s248 + $0x78] sm:$0xff] %vm919, %v873
      %935 = vst [vmem:[%s248 + $0x80] sm:$0xff] %v874
      %936 = vst.msk [vmem:[%s248 + $0x88] sm:$0xff] %vm919, %v875
      %937 = vst [vmem:[%s248 + $0x90] sm:$0xff] %v876
      %938 = vst.msk [vmem:[%s248 + $0x98] sm:$0xff] %vm919, %v877
      %939 = vst [vmem:[%s248 + $0xa0] sm:$0xff] %v878
      %940 = vst.msk [vmem:[%s248 + $0xa8] sm:$0xff] %vm919, %v879
      %941 = vst [vmem:[%s248 + $0xb0] sm:$0xff] %v880
      %942 = vst.msk [vmem:[%s248 + $0xb8] sm:$0xff] %vm919, %v881
      %943 = vst [vmem:[%s248 + $0xc0] sm:$0xff] %v882
      %944 = vst.msk [vmem:[%s248 + $0xc8] sm:$0xff] %vm919, %v883
      %945 = vst [vmem:[%s248 + $0xd0] sm:$0xff] %v884
      %946 = vst.msk [vmem:[%s248 + $0xd8] sm:$0xff] %vm919, %v885
      %947 = vst [vmem:[%s248 + $0xe0] sm:$0xff] %v886
      %948 = vst.msk [vmem:[%s248 + $0xe8] sm:$0xff] %vm919, %v887
      %949 = vst [vmem:[%s248 + $0xf0] sm:$0xff] %v888
      %950 = vst.msk [vmem:[%s248 + $0xf8] sm:$0xff] %vm919, %v889
      %951 = vst [vmem:[%s248 + $0x100] sm:$0xff] %v890
      %952 = vst.msk [vmem:[%s248 + $0x108] sm:$0xff] %vm919, %v891
      %953 = vst [vmem:[%s248 + $0x110] sm:$0xff] %v892
      %954 = vst.msk [vmem:[%s248 + $0x118] sm:$0xff] %vm919, %v893
      %955 = vst [vmem:[%s248 + $0x120] sm:$0xff] %v894
      %956 = vst.msk [vmem:[%s248 + $0x128] sm:$0xff] %vm919, %v895
      %957 = vst [vmem:[%s248 + $0x130] sm:$0xff] %v896
      %958 = vst.msk [vmem:[%s248 + $0x138] sm:$0xff] %vm919, %v897
      %959 = vst [vmem:[%s248 + $0x140] sm:$0xff] %v898
      %960 = vst.msk [vmem:[%s248 + $0x148] sm:$0xff] %vm919, %v899
      %961 = vst [vmem:[%s248 + $0x150] sm:$0xff] %v900
      %962 = vst.msk [vmem:[%s248 + $0x158] sm:$0xff] %vm919, %v901
      %963 = vst [vmem:[%s248 + $0x160] sm:$0xff] %v902
      %964 = vst.msk [vmem:[%s248 + $0x168] sm:$0xff] %vm919, %v903
      %965 = vst [vmem:[%s248 + $0x170] sm:$0xff] %v904
      %966 = vst.msk [vmem:[%s248 + $0x178] sm:$0xff] %vm919, %v905
      %967 = vst [vmem:[%s248 + $0x180] sm:$0xff] %v906
      %968 = vst.msk [vmem:[%s248 + $0x188] sm:$0xff] %vm919, %v907
      %969 = vst [vmem:[%s248 + $0x190] sm:$0xff] %v908
      %970 = vst.msk [vmem:[%s248 + $0x198] sm:$0xff] %vm919, %v909
      %971 = vst [vmem:[%s248 + $0x1a0] sm:$0xff] %v910
      %972 = vst.msk [vmem:[%s248 + $0x1a8] sm:$0xff] %vm919, %v911
      %973 = vst [vmem:[%s248 + $0x1b0] sm:$0xff] %v912
      %974 = vst.msk [vmem:[%s248 + $0x1b8] sm:$0xff] %vm919, %v913
      %975 = vst [vmem:[%s248 + $0x1c0] sm:$0xff] %v914
      %976 = vst.msk [vmem:[%s248 + $0x1c8] sm:$0xff] %vm919, %v915
      %977 = vst [vmem:[%s248 + $0x1d0] sm:$0xff] %v916
      %978 = vst.msk [vmem:[%s248 + $0x1d8] sm:$0xff] %vm919, %v917
      %s979 = smul.u32 30, %s15
      %p980 = scmp.lt.s32.totalorder %s979, 59
      %s981 = scalar_select %p980, %s979, 59
      %s982 = smul.addr %s981, 2
      %s983 = smul.addr %s982, 8
      %s984 = scalar_lea.vmem %s4, %s983
      // Predicated region
      $region37: #{tpu_custom_call.1} parent=35 // pred_check
        %p985 = pneg %p132
      $region38: #{tpu_custom_call.1} parent=35 // pred_check_branch
        %987 = sbr.rel (%p985) target = $region40
      $region39: #{tpu_custom_call.1} parent=35 // pred_region
        %s988 = smul.u32 30, %s15
      $region40: #{tpu_custom_call.1} parent=35 // pred_fallthru
        _
    $region36: #{tpu_custom_call.1} parent=5 // pred_fallthru
      _
    %p989 = scmp.le.s32.totalorder 2, %s10
    // Predicated region
    $region41: #{tpu_custom_call.1} parent=5 // pred_check
      %p990 = pneg %p989
    $region42: #{tpu_custom_call.1} parent=5 // pred_check_branch
      %992 = sbr.rel (%p990) target = $region44
    $region43: #{tpu_custom_call.1} parent=5 // pred_region
      %s993 = ssub.s32 %s10, 2
      // Predicated region
      $region45: #{tpu_custom_call.1} parent=43 // pred_check
        %p994 = pneg %p138
      $region46: #{tpu_custom_call.1} parent=43 // pred_check_branch
        %996 = sbr.rel (%p994) target = $region48
      $region47: #{tpu_custom_call.1} parent=43 // pred_region
        %s997 = smul.u32 30, %s16
        %p998 = scmp.lt.s32.totalorder %s997, 59
        %s999 = scalar_select %p998, %s997, 59
        %s1000 = smul.addr %s999, 2
        %s1001 = smul.addr %s1000, 8
        %s1002 = scalar_lea.vmem %s4, %s1001
      $region48: #{tpu_custom_call.1} parent=43 // pred_fallthru
        _
    $region44: #{tpu_custom_call.1} parent=5 // pred_fallthru
      _
  $region6: #{tpu_custom_call.1} parent=0 // loop_footer
    %s14 = sadd.s32 1, %s10
  $region7: #{tpu_custom_call.1} parent=0 // loop_footer_branch
    %9 = sbr.rel target = $region3
  $region8: #{tpu_custom_call.1} parent=0 // loop_exit
    _

</llo_original>
